<compile_context>
chip_gen: v7x
topology: tpu7x:2x2x1
jax: 0.10.0
libtpu: 0.0.40
codegen_flags: <defaults>
</compile_context>

<pallas_src>
import functools

import jax
import jax.numpy as jnp
from jax import lax
from jax.experimental import pallas as pl
from jax.experimental.pallas import tpu as pltpu


def _aaconv_kernel(x_ref, w_ref, b_ref, m_ref, out_ref, *, C, H, W):
    """One batch image of AAConv, entirely in the lane-dense (C, H*W) layout.

    x_ref  : (1, C, H*W)   input slab (cast to bf16 in-kernel for the MXU)
    w_ref  : (11, C, C)    bf16 matmul-LHS weights: 9 fused-conv taps
                           (index t = dy*3 + dx), then GA gate w1, GA gate w2
                           (each stored as (C_out, C_in))
    b_ref  : (3, C, 1)     f32 biases: fused conv, gate1, gate2
    m_ref  : (8, 1, H*W)   f32 0/1 border masks for the 8 off-center taps
    out_ref: (1, C, H*W)   output slab (already NCHW after a free reshape)
    """
    HW = H * W
    x = x_ref[0].astype(jnp.bfloat16)                        # (C, HW)

    # ---- fused FAConv: 9 accumulated (C,C)@(C,HW) matmuls -------------------
    # The shift of tap (dy,dx) is applied to the f32 *result* (roll + mask),
    # so the bf16 activations never get sliced / re-laid-out.
    # Center tap (dy=dx=1, includes the folded 1x1 conv) needs no shift/mask.
    acc = jnp.dot(w_ref[4], x, preferred_element_type=jnp.float32) + b_ref[0]
    k = 0
    for t in range(9):
        if t == 4:
            continue
        dy, dx = divmod(t, 3)
        shift = (-((dy - 1) * W + (dx - 1))) % HW            # static python int
        z = jnp.dot(w_ref[t], x, preferred_element_type=jnp.float32)  # (C, HW)
        acc = acc + pltpu.roll(z, shift, axis=1) * m_ref[k]
        k += 1

    # ---- GA gate: sigmoid(relu(Wg1 x + b1) Wg2 + b2), lane-dense ------------
    mid = jnp.maximum(
        jnp.dot(w_ref[9], x, preferred_element_type=jnp.float32) + b_ref[1],
        0.0)
    attn = jax.nn.sigmoid(
        jnp.dot(w_ref[10], mid.astype(jnp.bfloat16),
                preferred_element_type=jnp.float32) + b_ref[2])

    out_ref[0] = (attn * acc).astype(out_ref.dtype)


def aaconv_forward(x_nchw, params, *, out_dtype=jnp.float32):
    (wsq, bsq, wpw, bpw, wv, bv, wh, bh, wg1, bg1, wg2, bg2) = params
    N, C, H, W = x_nchw.shape
    HW = H * W
    # Whole image per grid step; plenty of VMEM headroom for HDMba patches.
    assert C * HW <= (1 << 20), "image too large for single-step tiling (see TODO)"

    # ---- fold pointwise / vertical / horizontal convs into the 3x3 weight ---
    w_fused = wsq                                    # (3, 3, Cin, Cout) HWIO
    w_fused = w_fused.at[1, 1].add(wpw)              # 1x1   -> center tap
    w_fused = w_fused.at[:, 1].add(wv)               # (3,1) -> middle column
    w_fused = w_fused.at[1, :].add(wh)               # (1,3) -> middle row
    b_fused = bsq + bpw + bv + bh                    # (1, C)

    # ---- pack all matmul-LHS weights: 9 taps + 2 gate mats, each (Cout, Cin)
    w_taps = jnp.transpose(w_fused.reshape(9, C, C), (0, 2, 1))
    w_all = jnp.concatenate([w_taps, wg1.T[None], wg2.T[None]],
                            axis=0).astype(jnp.bfloat16)           # (11, C, C)
    b_all = jnp.stack([b_fused[0], bg1[0], bg2[0]],
                      axis=0)[:, :, None].astype(jnp.float32)       # (3, C, 1)

    # ---- 0/1 border masks for the 8 off-center taps -------------------------
    # Output index p = y*W + x keeps tap (dy,dx) iff (y+dy-1, x+dx-1) is inside.
    yi, xi = jnp.meshgrid(jnp.arange(H), jnp.arange(W), indexing="ij")
    masks = []
    for t in range(9):
        if t == 4:
            continue
        dy, dx = divmod(t, 3)
        sy, sx = dy - 1, dx - 1
        valid = ((yi + sy >= 0) & (yi + sy < H) &
                 (xi + sx >= 0) & (xi + sx < W))
        masks.append(valid.reshape(HW))
    m_all = jnp.stack(masks, axis=0)[:, None, :].astype(jnp.float32)  # (8,1,HW)

    x_flat = x_nchw.reshape(N, C, HW)                # free reshape, stays NCHW

    kernel = functools.partial(_aaconv_kernel, C=C, H=H, W=W)
    out = pl.pallas_call(
        kernel,
        out_shape=jax.ShapeDtypeStruct((N, C, HW), out_dtype),
        grid_spec=pltpu.PrefetchScalarGridSpec(
            num_scalar_prefetch=0,
            grid=(N,),
            in_specs=[
                pl.BlockSpec((1, C, HW), lambda n: (n, 0, 0)),
                pl.BlockSpec(w_all.shape, lambda n: (0, 0, 0)),
                pl.BlockSpec(b_all.shape, lambda n: (0, 0, 0)),
                pl.BlockSpec(m_all.shape, lambda n: (0, 0, 0)),
            ],
            out_specs=pl.BlockSpec((1, C, HW), lambda n: (n, 0, 0)),
        ),
        compiler_params=pltpu.CompilerParams(
            dimension_semantics=("parallel",)),
    )(x_flat, w_all, b_all, m_all)

    return out.reshape(N, C, H, W)                   # free reshape, already NCHW


def init_params(key, C):
    ks = jax.random.split(key, 12)
    s = 0.2
    wsq = s * jax.random.normal(ks[0], (3, 3, C, C), jnp.float32)   # (kh, kw, Cin, Cout)
    bsq = s * jax.random.normal(ks[1], (1, C), jnp.float32)
    wpw = s * jax.random.normal(ks[2], (C, C), jnp.float32)
    bpw = s * jax.random.normal(ks[3], (1, C), jnp.float32)
    wv  = s * jax.random.normal(ks[4], (3, C, C), jnp.float32)      # (kh, Cin, Cout)
    bv  = s * jax.random.normal(ks[5], (1, C), jnp.float32)
    wh  = s * jax.random.normal(ks[6], (3, C, C), jnp.float32)      # (kw, Cin, Cout)
    bh  = s * jax.random.normal(ks[7], (1, C), jnp.float32)
    wg1 = s * jax.random.normal(ks[8], (C, C), jnp.float32)
    bg1 = s * jax.random.normal(ks[9], (1, C), jnp.float32)
    wg2 = s * jax.random.normal(ks[10], (C, C), jnp.float32)
    bg2 = s * jax.random.normal(ks[11], (1, C), jnp.float32)
    return (wsq, bsq, wpw, bpw, wv, bv, wh, bh, wg1, bg1, wg2, bg2)


def aaconv_reference(x_nchw, params):
    """Pure-JAX f32 reference (lax.conv) matching the PyTorch forward."""
    (wsq, bsq, wpw, bpw, wv, bv, wh, bh, wg1, bg1, wg2, bg2) = params
    x = jnp.transpose(x_nchw, (0, 2, 3, 1)).astype(jnp.float32)
    dn = ('NHWC', 'HWIO', 'NHWC')
    sq = lax.conv_general_dilated(x, wsq, (1, 1), ((1, 1), (1, 1)),
                                  dimension_numbers=dn) + bsq[0]
    pw = lax.conv_general_dilated(x, wpw[None, None], (1, 1), 'VALID',
                                  dimension_numbers=dn) + bpw[0]
    ver = lax.conv_general_dilated(x, wv[:, None], (1, 1), ((1, 1), (0, 0)),
                                   dimension_numbers=dn) + bv[0]
    hor = lax.conv_general_dilated(x, wh[None], (1, 1), ((0, 0), (1, 1)),
                                   dimension_numbers=dn) + bh[0]
    fa = sq + pw + ver + hor
    mid = jax.nn.relu(jnp.einsum('nhwc,cd->nhwd', x, wg1) + bg1[0])
    attn = jax.nn.sigmoid(jnp.einsum('nhwc,cd->nhwd', mid, wg2) + bg2[0])
    return jnp.transpose(attn * fa, (0, 3, 1, 2))


if __name__ == "__main__":
    key = jax.random.PRNGKey(0)
    kx, kp = jax.random.split(key)
    N, C, H, W = 2, 4, 16, 16                  # dim=4, kernel=3, padding=1, stride=1
    x = jax.random.normal(kx, (N, C, H, W), jnp.float32)
    params = init_params(kp, C)

    out = jax.block_until_ready(jax.jit(aaconv_forward)(x, params))
    ref = jax.block_until_ready(aaconv_reference(x, params))
    assert out.shape == (N, C, H, W)

    # bf16 MXU inputs + fused-weight re-association => relaxed tolerance.
    err = jnp.max(jnp.abs(out - ref) / (jnp.abs(ref) + 1.0))
    ok = bool(jnp.isfinite(err)) and float(err) <= 5e-2
    if not ok:
        raise AssertionError(f"mismatch vs reference: max rel err {float(err)}")
    print("KERNEL_OK")
</pallas_src>

<mosaic_0001>
module attributes {stable_mosaic.version = 11 : i64} {
  func.func @_aaconv_kernel(%arg0: i32, %arg1: memref<1x4x256xf32, #tpu.memory_space<vmem>>, %arg2: memref<11x4x4xbf16, #tpu.memory_space<vmem>>, %arg3: memref<3x4x1xf32, #tpu.memory_space<vmem>>, %arg4: memref<8x1x256xf32, #tpu.memory_space<vmem>>, %arg5: memref<1x4x256xf32, #tpu.memory_space<vmem>>) attributes {dimension_semantics = [#tpu.dimension_semantics<parallel>], iteration_bounds = array<i64: 2>, scalar_prefetch = 0 : i64, scratch_operands = 0 : i64, tpu.core_type = #tpu.core_type<tc>, window_params = [{transform_indices = @transform_0, window_bounds = array<i64: 1, 4, 256>}, {pipeline_mode = #tpu.pipeline_mode<synchronous>, transform_indices = @transform_1, window_bounds = array<i64: 11, 4, 4>}, {pipeline_mode = #tpu.pipeline_mode<synchronous>, transform_indices = @transform_2, window_bounds = array<i64: 3, 4, 1>}, {pipeline_mode = #tpu.pipeline_mode<synchronous>, transform_indices = @transform_3, window_bounds = array<i64: 8, 1, 256>}, {transform_indices = @transform_4, window_bounds = array<i64: 1, 4, 256>}]} {
    %c0 = arith.constant 0 : index
    %c0_0 = arith.constant 0 : index
    %c0_1 = arith.constant 0 : index
    %0 = vector.load %arg1[%c0, %c0_0, %c0_1] : memref<1x4x256xf32, #tpu.memory_space<vmem>>, vector<1x4x256xf32>
    %1 = vector.shape_cast %0 : vector<1x4x256xf32> to vector<4x256xf32>
    %2 = arith.truncf %1 : vector<4x256xf32> to vector<4x256xbf16>
    %c4 = arith.constant 4 : index
    %c0_2 = arith.constant 0 : index
    %c0_3 = arith.constant 0 : index
    %3 = vector.load %arg2[%c4, %c0_2, %c0_3] : memref<11x4x4xbf16, #tpu.memory_space<vmem>>, vector<1x4x4xbf16>
    %4 = vector.shape_cast %3 : vector<1x4x4xbf16> to vector<4x4xbf16>
    %cst = arith.constant dense<0.000000e+00> : vector<4x256xf32>
    %5 = tpu.matmul %4, %2, %cst {dimension_numbers = #tpu.dot_dimension_numbers<[1], [0], [0], [1], [0, 0, 1, 1], [], []>} : vector<4x4xbf16>, vector<4x256xbf16>, vector<4x256xf32> -> vector<4x256xf32>
    %c0_4 = arith.constant 0 : index
    %c0_5 = arith.constant 0 : index
    %c0_6 = arith.constant 0 : index
    %6 = vector.load %arg3[%c0_4, %c0_5, %c0_6] : memref<3x4x1xf32, #tpu.memory_space<vmem>>, vector<1x4x1xf32>
    %7 = vector.shape_cast %6 : vector<1x4x1xf32> to vector<4x1xf32>
    %8 = vector.broadcast %7 : vector<4x1xf32> to vector<4x256xf32>
    %9 = arith.addf %5, %8 : vector<4x256xf32>
    %c0_7 = arith.constant 0 : index
    %c0_8 = arith.constant 0 : index
    %c0_9 = arith.constant 0 : index
    %10 = vector.load %arg2[%c0_7, %c0_8, %c0_9] : memref<11x4x4xbf16, #tpu.memory_space<vmem>>, vector<1x4x4xbf16>
    %11 = vector.shape_cast %10 : vector<1x4x4xbf16> to vector<4x4xbf16>
    %cst_10 = arith.constant dense<0.000000e+00> : vector<4x256xf32>
    %12 = tpu.matmul %11, %2, %cst_10 {dimension_numbers = #tpu.dot_dimension_numbers<[1], [0], [0], [1], [0, 0, 1, 1], [], []>} : vector<4x4xbf16>, vector<4x256xbf16>, vector<4x256xf32> -> vector<4x256xf32>
    %c17_i32 = arith.constant 17 : i32
    %13 = tpu.dynamic_rotate %12 by %c17_i32 dim 1 : vector<4x256xf32>, i32 -> vector<4x256xf32>
    %c0_11 = arith.constant 0 : index
    %c0_12 = arith.constant 0 : index
    %c0_13 = arith.constant 0 : index
    %14 = vector.load %arg4[%c0_11, %c0_12, %c0_13] : memref<8x1x256xf32, #tpu.memory_space<vmem>>, vector<1x1x256xf32>
    %15 = vector.shape_cast %14 : vector<1x1x256xf32> to vector<1x256xf32>
    %16 = vector.broadcast %15 : vector<1x256xf32> to vector<4x256xf32>
    %17 = arith.mulf %13, %16 : vector<4x256xf32>
    %18 = arith.addf %9, %17 : vector<4x256xf32>
    %c1 = arith.constant 1 : index
    %c0_14 = arith.constant 0 : index
    %c0_15 = arith.constant 0 : index
    %19 = vector.load %arg2[%c1, %c0_14, %c0_15] : memref<11x4x4xbf16, #tpu.memory_space<vmem>>, vector<1x4x4xbf16>
    %20 = vector.shape_cast %19 : vector<1x4x4xbf16> to vector<4x4xbf16>
    %cst_16 = arith.constant dense<0.000000e+00> : vector<4x256xf32>
    %21 = tpu.matmul %20, %2, %cst_16 {dimension_numbers = #tpu.dot_dimension_numbers<[1], [0], [0], [1], [0, 0, 1, 1], [], []>} : vector<4x4xbf16>, vector<4x256xbf16>, vector<4x256xf32> -> vector<4x256xf32>
    %c16_i32 = arith.constant 16 : i32
    %22 = tpu.dynamic_rotate %21 by %c16_i32 dim 1 : vector<4x256xf32>, i32 -> vector<4x256xf32>
    %c1_17 = arith.constant 1 : index
    %c0_18 = arith.constant 0 : index
    %c0_19 = arith.constant 0 : index
    %23 = vector.load %arg4[%c1_17, %c0_18, %c0_19] : memref<8x1x256xf32, #tpu.memory_space<vmem>>, vector<1x1x256xf32>
    %24 = vector.shape_cast %23 : vector<1x1x256xf32> to vector<1x256xf32>
    %25 = vector.broadcast %24 : vector<1x256xf32> to vector<4x256xf32>
    %26 = arith.mulf %22, %25 : vector<4x256xf32>
    %27 = arith.addf %18, %26 : vector<4x256xf32>
    %c2 = arith.constant 2 : index
    %c0_20 = arith.constant 0 : index
    %c0_21 = arith.constant 0 : index
    %28 = vector.load %arg2[%c2, %c0_20, %c0_21] : memref<11x4x4xbf16, #tpu.memory_space<vmem>>, vector<1x4x4xbf16>
    %29 = vector.shape_cast %28 : vector<1x4x4xbf16> to vector<4x4xbf16>
    %cst_22 = arith.constant dense<0.000000e+00> : vector<4x256xf32>
    %30 = tpu.matmul %29, %2, %cst_22 {dimension_numbers = #tpu.dot_dimension_numbers<[1], [0], [0], [1], [0, 0, 1, 1], [], []>} : vector<4x4xbf16>, vector<4x256xbf16>, vector<4x256xf32> -> vector<4x256xf32>
    %c15_i32 = arith.constant 15 : i32
    %31 = tpu.dynamic_rotate %30 by %c15_i32 dim 1 : vector<4x256xf32>, i32 -> vector<4x256xf32>
    %c2_23 = arith.constant 2 : index
    %c0_24 = arith.constant 0 : index
    %c0_25 = arith.constant 0 : index
    %32 = vector.load %arg4[%c2_23, %c0_24, %c0_25] : memref<8x1x256xf32, #tpu.memory_space<vmem>>, vector<1x1x256xf32>
    %33 = vector.shape_cast %32 : vector<1x1x256xf32> to vector<1x256xf32>
    %34 = vector.broadcast %33 : vector<1x256xf32> to vector<4x256xf32>
    %35 = arith.mulf %31, %34 : vector<4x256xf32>
    %36 = arith.addf %27, %35 : vector<4x256xf32>
    %c3 = arith.constant 3 : index
    %c0_26 = arith.constant 0 : index
    %c0_27 = arith.constant 0 : index
    %37 = vector.load %arg2[%c3, %c0_26, %c0_27] : memref<11x4x4xbf16, #tpu.memory_space<vmem>>, vector<1x4x4xbf16>
    %38 = vector.shape_cast %37 : vector<1x4x4xbf16> to vector<4x4xbf16>
    %cst_28 = arith.constant dense<0.000000e+00> : vector<4x256xf32>
    %39 = tpu.matmul %38, %2, %cst_28 {dimension_numbers = #tpu.dot_dimension_numbers<[1], [0], [0], [1], [0, 0, 1, 1], [], []>} : vector<4x4xbf16>, vector<4x256xbf16>, vector<4x256xf32> -> vector<4x256xf32>
    %c1_i32 = arith.constant 1 : i32
    %40 = tpu.dynamic_rotate %39 by %c1_i32 dim 1 : vector<4x256xf32>, i32 -> vector<4x256xf32>
    %c3_29 = arith.constant 3 : index
    %c0_30 = arith.constant 0 : index
    %c0_31 = arith.constant 0 : index
    %41 = vector.load %arg4[%c3_29, %c0_30, %c0_31] : memref<8x1x256xf32, #tpu.memory_space<vmem>>, vector<1x1x256xf32>
    %42 = vector.shape_cast %41 : vector<1x1x256xf32> to vector<1x256xf32>
    %43 = vector.broadcast %42 : vector<1x256xf32> to vector<4x256xf32>
    %44 = arith.mulf %40, %43 : vector<4x256xf32>
    %45 = arith.addf %36, %44 : vector<4x256xf32>
    %c5 = arith.constant 5 : index
    %c0_32 = arith.constant 0 : index
    %c0_33 = arith.constant 0 : index
    %46 = vector.load %arg2[%c5, %c0_32, %c0_33] : memref<11x4x4xbf16, #tpu.memory_space<vmem>>, vector<1x4x4xbf16>
    %47 = vector.shape_cast %46 : vector<1x4x4xbf16> to vector<4x4xbf16>
    %cst_34 = arith.constant dense<0.000000e+00> : vector<4x256xf32>
    %48 = tpu.matmul %47, %2, %cst_34 {dimension_numbers = #tpu.dot_dimension_numbers<[1], [0], [0], [1], [0, 0, 1, 1], [], []>} : vector<4x4xbf16>, vector<4x256xbf16>, vector<4x256xf32> -> vector<4x256xf32>
    %c255_i32 = arith.constant 255 : i32
    %49 = tpu.dynamic_rotate %48 by %c255_i32 dim 1 : vector<4x256xf32>, i32 -> vector<4x256xf32>
    %c4_35 = arith.constant 4 : index
    %c0_36 = arith.constant 0 : index
    %c0_37 = arith.constant 0 : index
    %50 = vector.load %arg4[%c4_35, %c0_36, %c0_37] : memref<8x1x256xf32, #tpu.memory_space<vmem>>, vector<1x1x256xf32>
    %51 = vector.shape_cast %50 : vector<1x1x256xf32> to vector<1x256xf32>
    %52 = vector.broadcast %51 : vector<1x256xf32> to vector<4x256xf32>
    %53 = arith.mulf %49, %52 : vector<4x256xf32>
    %54 = arith.addf %45, %53 : vector<4x256xf32>
    %c6 = arith.constant 6 : index
    %c0_38 = arith.constant 0 : index
    %c0_39 = arith.constant 0 : index
    %55 = vector.load %arg2[%c6, %c0_38, %c0_39] : memref<11x4x4xbf16, #tpu.memory_space<vmem>>, vector<1x4x4xbf16>
    %56 = vector.shape_cast %55 : vector<1x4x4xbf16> to vector<4x4xbf16>
    %cst_40 = arith.constant dense<0.000000e+00> : vector<4x256xf32>
    %57 = tpu.matmul %56, %2, %cst_40 {dimension_numbers = #tpu.dot_dimension_numbers<[1], [0], [0], [1], [0, 0, 1, 1], [], []>} : vector<4x4xbf16>, vector<4x256xbf16>, vector<4x256xf32> -> vector<4x256xf32>
    %c241_i32 = arith.constant 241 : i32
    %58 = tpu.dynamic_rotate %57 by %c241_i32 dim 1 : vector<4x256xf32>, i32 -> vector<4x256xf32>
    %c5_41 = arith.constant 5 : index
    %c0_42 = arith.constant 0 : index
    %c0_43 = arith.constant 0 : index
    %59 = vector.load %arg4[%c5_41, %c0_42, %c0_43] : memref<8x1x256xf32, #tpu.memory_space<vmem>>, vector<1x1x256xf32>
    %60 = vector.shape_cast %59 : vector<1x1x256xf32> to vector<1x256xf32>
    %61 = vector.broadcast %60 : vector<1x256xf32> to vector<4x256xf32>
    %62 = arith.mulf %58, %61 : vector<4x256xf32>
    %63 = arith.addf %54, %62 : vector<4x256xf32>
    %c7 = arith.constant 7 : index
    %c0_44 = arith.constant 0 : index
    %c0_45 = arith.constant 0 : index
    %64 = vector.load %arg2[%c7, %c0_44, %c0_45] : memref<11x4x4xbf16, #tpu.memory_space<vmem>>, vector<1x4x4xbf16>
    %65 = vector.shape_cast %64 : vector<1x4x4xbf16> to vector<4x4xbf16>
    %cst_46 = arith.constant dense<0.000000e+00> : vector<4x256xf32>
    %66 = tpu.matmul %65, %2, %cst_46 {dimension_numbers = #tpu.dot_dimension_numbers<[1], [0], [0], [1], [0, 0, 1, 1], [], []>} : vector<4x4xbf16>, vector<4x256xbf16>, vector<4x256xf32> -> vector<4x256xf32>
    %c240_i32 = arith.constant 240 : i32
    %67 = tpu.dynamic_rotate %66 by %c240_i32 dim 1 : vector<4x256xf32>, i32 -> vector<4x256xf32>
    %c6_47 = arith.constant 6 : index
    %c0_48 = arith.constant 0 : index
    %c0_49 = arith.constant 0 : index
    %68 = vector.load %arg4[%c6_47, %c0_48, %c0_49] : memref<8x1x256xf32, #tpu.memory_space<vmem>>, vector<1x1x256xf32>
    %69 = vector.shape_cast %68 : vector<1x1x256xf32> to vector<1x256xf32>
    %70 = vector.broadcast %69 : vector<1x256xf32> to vector<4x256xf32>
    %71 = arith.mulf %67, %70 : vector<4x256xf32>
    %72 = arith.addf %63, %71 : vector<4x256xf32>
    %c8 = arith.constant 8 : index
    %c0_50 = arith.constant 0 : index
    %c0_51 = arith.constant 0 : index
    %73 = vector.load %arg2[%c8, %c0_50, %c0_51] : memref<11x4x4xbf16, #tpu.memory_space<vmem>>, vector<1x4x4xbf16>
    %74 = vector.shape_cast %73 : vector<1x4x4xbf16> to vector<4x4xbf16>
    %cst_52 = arith.constant dense<0.000000e+00> : vector<4x256xf32>
    %75 = tpu.matmul %74, %2, %cst_52 {dimension_numbers = #tpu.dot_dimension_numbers<[1], [0], [0], [1], [0, 0, 1, 1], [], []>} : vector<4x4xbf16>, vector<4x256xbf16>, vector<4x256xf32> -> vector<4x256xf32>
    %c239_i32 = arith.constant 239 : i32
    %76 = tpu.dynamic_rotate %75 by %c239_i32 dim 1 : vector<4x256xf32>, i32 -> vector<4x256xf32>
    %c7_53 = arith.constant 7 : index
    %c0_54 = arith.constant 0 : index
    %c0_55 = arith.constant 0 : index
    %77 = vector.load %arg4[%c7_53, %c0_54, %c0_55] : memref<8x1x256xf32, #tpu.memory_space<vmem>>, vector<1x1x256xf32>
    %78 = vector.shape_cast %77 : vector<1x1x256xf32> to vector<1x256xf32>
    %79 = vector.broadcast %78 : vector<1x256xf32> to vector<4x256xf32>
    %80 = arith.mulf %76, %79 : vector<4x256xf32>
    %81 = arith.addf %72, %80 : vector<4x256xf32>
    %c9 = arith.constant 9 : index
    %c0_56 = arith.constant 0 : index
    %c0_57 = arith.constant 0 : index
    %82 = vector.load %arg2[%c9, %c0_56, %c0_57] : memref<11x4x4xbf16, #tpu.memory_space<vmem>>, vector<1x4x4xbf16>
    %83 = vector.shape_cast %82 : vector<1x4x4xbf16> to vector<4x4xbf16>
    %cst_58 = arith.constant dense<0.000000e+00> : vector<4x256xf32>
    %84 = tpu.matmul %83, %2, %cst_58 {dimension_numbers = #tpu.dot_dimension_numbers<[1], [0], [0], [1], [0, 0, 1, 1], [], []>} : vector<4x4xbf16>, vector<4x256xbf16>, vector<4x256xf32> -> vector<4x256xf32>
    %c1_59 = arith.constant 1 : index
    %c0_60 = arith.constant 0 : index
    %c0_61 = arith.constant 0 : index
    %85 = vector.load %arg3[%c1_59, %c0_60, %c0_61] : memref<3x4x1xf32, #tpu.memory_space<vmem>>, vector<1x4x1xf32>
    %86 = vector.shape_cast %85 : vector<1x4x1xf32> to vector<4x1xf32>
    %87 = vector.broadcast %86 : vector<4x1xf32> to vector<4x256xf32>
    %88 = arith.addf %84, %87 : vector<4x256xf32>
    %cst_62 = arith.constant 0.000000e+00 : f32
    %89 = vector.broadcast %cst_62 : f32 to vector<4x256xf32>
    %90 = arith.maximumf %88, %89 : vector<4x256xf32>
    %c10 = arith.constant 10 : index
    %c0_63 = arith.constant 0 : index
    %c0_64 = arith.constant 0 : index
    %91 = vector.load %arg2[%c10, %c0_63, %c0_64] : memref<11x4x4xbf16, #tpu.memory_space<vmem>>, vector<1x4x4xbf16>
    %92 = vector.shape_cast %91 : vector<1x4x4xbf16> to vector<4x4xbf16>
    %93 = arith.truncf %90 : vector<4x256xf32> to vector<4x256xbf16>
    %cst_65 = arith.constant dense<0.000000e+00> : vector<4x256xf32>
    %94 = tpu.matmul %92, %93, %cst_65 {dimension_numbers = #tpu.dot_dimension_numbers<[1], [0], [0], [1], [0, 0, 1, 1], [], []>} : vector<4x4xbf16>, vector<4x256xbf16>, vector<4x256xf32> -> vector<4x256xf32>
    %c2_66 = arith.constant 2 : index
    %c0_67 = arith.constant 0 : index
    %c0_68 = arith.constant 0 : index
    %95 = vector.load %arg3[%c2_66, %c0_67, %c0_68] : memref<3x4x1xf32, #tpu.memory_space<vmem>>, vector<1x4x1xf32>
    %96 = vector.shape_cast %95 : vector<1x4x1xf32> to vector<4x1xf32>
    %97 = vector.broadcast %96 : vector<4x1xf32> to vector<4x256xf32>
    %98 = arith.addf %94, %97 : vector<4x256xf32>
    %99 = arith.negf %98 : vector<4x256xf32>
    %100 = math.exp %99 : vector<4x256xf32>
    %cst_69 = arith.constant 1.000000e+00 : f32
    %101 = vector.broadcast %cst_69 : f32 to vector<4x256xf32>
    %102 = arith.addf %101, %100 : vector<4x256xf32>
    %103 = arith.divf %101, %102 : vector<4x256xf32>
    %104 = arith.mulf %103, %81 : vector<4x256xf32>
    %c0_70 = arith.constant 0 : index
    %c0_71 = arith.constant 0 : index
    %c0_72 = arith.constant 0 : index
    %105 = vector.load %arg5[%c0_70, %c0_71, %c0_72] : memref<1x4x256xf32, #tpu.memory_space<vmem>>, vector<1x4x256xf32>
    %106 = vector.shape_cast %105 : vector<1x4x256xf32> to vector<4x256xf32>
    %107 = vector.shape_cast %104 : vector<4x256xf32> to vector<1x4x256xf32>
    tpu.vector_store %arg5[%c0_70, %c0_71, %c0_72], %107 {strides = array<i32>} : memref<1x4x256xf32, #tpu.memory_space<vmem>>, vector<1x4x256xf32>,
    return
  }
  func.func @transform_0(%arg0: i32) -> (i32, i32, i32) {
    %c0_i32 = arith.constant 0 : i32
    %c0_i32_0 = arith.constant 0 : i32
    %c0_i32_1 = arith.constant 0 : i32
    return %arg0, %c0_i32, %c0_i32_0 : i32, i32, i32
  }
  func.func @transform_1(%arg0: i32) -> (i32, i32, i32) {
    %c0_i32 = arith.constant 0 : i32
    %c0_i32_0 = arith.constant 0 : i32
    %c0_i32_1 = arith.constant 0 : i32
    %c0_i32_2 = arith.constant 0 : i32
    return %c0_i32, %c0_i32_0, %c0_i32_1 : i32, i32, i32
  }
  func.func @transform_2(%arg0: i32) -> (i32, i32, i32) {
    %c0_i32 = arith.constant 0 : i32
    %c0_i32_0 = arith.constant 0 : i32
    %c0_i32_1 = arith.constant 0 : i32
    %c0_i32_2 = arith.constant 0 : i32
    return %c0_i32, %c0_i32_0, %c0_i32_1 : i32, i32, i32
  }
  func.func @transform_3(%arg0: i32) -> (i32, i32, i32) {
    %c0_i32 = arith.constant 0 : i32
    %c0_i32_0 = arith.constant 0 : i32
    %c0_i32_1 = arith.constant 0 : i32
    %c0_i32_2 = arith.constant 0 : i32
    return %c0_i32, %c0_i32_0, %c0_i32_1 : i32, i32, i32
  }
  func.func @transform_4(%arg0: i32) -> (i32, i32, i32) {
    %c0_i32 = arith.constant 0 : i32
    %c0_i32_0 = arith.constant 0 : i32
    %c0_i32_1 = arith.constant 0 : i32
    return %arg0, %c0_i32, %c0_i32_0 : i32, i32, i32
  }
}

</mosaic_0001>

<llo_original>
// kernel: aaconv_forward.1
$region0: #{aaconv_forward.1}
  #allocation0 [shape = 'u32[]', space=smem, size = 0x4, offset = 0x4, fixed_abs, tag = 'smem constant byte address 0x4 - core index']
  #allocation1 [shape = 'u32[144,128]{1,0:T(1,128)}', space=vmem, size = 0x12000, scoped, tag = 'internal scratch']
  %s0 = inlined_call_operand.vmem [shape: f32[2,4,256], index: 0, kind: input, shape index: {}]
  %s1 = inlined_call_operand.vmem [shape: bf16[11,4,4], index: 1, kind: input, shape index: {}]
  %s2 = inlined_call_operand.vmem [shape: f32[3,4,1], index: 2, kind: input, shape index: {}]
  %s3 = inlined_call_operand.vmem [shape: f32[8,1,256], index: 3, kind: input, shape index: {}]
  %s4 = inlined_call_operand.vmem [shape: f32[2,4,256], index: 4, kind: output, shape index: {}]
  %s5 = sld [smem:[#allocation0]]
  $region49: #{aaconv_forward.1} parent=0
    _
  %s7 = ssub.s32 1, %s5
  %s8 = scalar_select 0, %s7, %s5
  loop: start=0, step=1, limit=4
  $region2: #{aaconv_forward.1} parent=0 // loop_pre_header
    _
  $region3: #{aaconv_forward.1} parent=0 // loop_header
    %s10 = sphi 0, %s14
    %p11 = scmp.ge.s32.totalorder %s10, 4
    %s20 = sphi 0, %s22
    %s23 = sphi 0, %s20
    %s24 = sphi 0, %s23
    %s40 = sphi 0, %s24
    %s44 = sphi 0, %s44
    %s46 = sphi 0, %s44
    %s47 = sphi 0, %s46
    %s61 = sphi 0, %s47
    %s65 = sphi 0, %s65
    %s67 = sphi 0, %s65
    %s68 = sphi 0, %s67
    %s82 = sphi 0, %s68
    %s86 = sphi 0, %s86
    %s88 = sphi 0, %s86
    %s89 = sphi 0, %s88
    %s103 = sphi 0, %s89
    %s109 = sphi 0, %s111
    %s112 = sphi 0, %s109
    %s113 = sphi 0, %s112
    %s129 = sphi 0, %s113
  $region4: #{aaconv_forward.1} parent=0 // loop_header_branch
    %13 = sbr.rel (%p11) target = $region8
  $region5: #{aaconv_forward.1} parent=0 // loop_body
    %s15 = ssub.s32 %s10, 1
    %s16 = ssub.s32 %s10, 2
    %s17 = sadd.s32 %s10, 1
    %s18 = ssub.s32 %s10, %s17
    %p19 = scmp.eq.s32.totalorder %s18, 0
    %s21 = sadd.s32 %s20, 1
    %s22 = scalar_select %p19, %s20, %s21
    %p25 = pneg %p19
    %p26 = scmp.eq.s32.totalorder %s10, 1
    %p27 = por %p25, %p26
    %p28 = scmp.ne.s32.totalorder %s20, %s23
    %p29 = scmp.eq.s32.totalorder %s10, 0
    %p30 = por %p28, %p29
    %p31 = scmp.ne.s32.totalorder %s20, %s23
    %p32 = scmp.eq.s32.totalorder %s15, 1
    %p33 = por %p31, %p32
    %p34 = scmp.ne.s32.totalorder %s23, %s24
    %p35 = scmp.eq.s32.totalorder %s15, 0
    %p36 = por %p34, %p35
    %p37 = scmp.ne.s32.totalorder %s23, %s24
    %p38 = scmp.eq.s32.totalorder %s16, 1
    %p39 = por %p37, %p38
    %p41 = scmp.ne.s32.totalorder %s24, %s40
    %p42 = scmp.eq.s32.totalorder %s16, 0
    %p43 = por %p41, %p42
    %s45 = sadd.s32 %s44, 1
    %p48 = scmp.eq.s32.totalorder %s10, 1
    %p49 = scmp.ne.s32.totalorder %s44, %s46
    %p50 = scmp.eq.s32.totalorder %s10, 0
    %p51 = por %p49, %p50
    %p52 = scmp.ne.s32.totalorder %s44, %s46
    %p53 = scmp.eq.s32.totalorder %s15, 1
    %p54 = por %p52, %p53
    %p55 = scmp.ne.s32.totalorder %s46, %s47
    %p56 = scmp.eq.s32.totalorder %s15, 0
    %p57 = por %p55, %p56
    %p58 = scmp.ne.s32.totalorder %s46, %s47
    %p59 = scmp.eq.s32.totalorder %s16, 1
    %p60 = por %p58, %p59
    %p62 = scmp.ne.s32.totalorder %s47, %s61
    %p63 = scmp.eq.s32.totalorder %s16, 0
    %p64 = por %p62, %p63
    %s66 = sadd.s32 %s65, 1
    %p69 = scmp.eq.s32.totalorder %s10, 1
    %p70 = scmp.ne.s32.totalorder %s65, %s67
    %p71 = scmp.eq.s32.totalorder %s10, 0
    %p72 = por %p70, %p71
    %p73 = scmp.ne.s32.totalorder %s65, %s67
    %p74 = scmp.eq.s32.totalorder %s15, 1
    %p75 = por %p73, %p74
    %p76 = scmp.ne.s32.totalorder %s67, %s68
    %p77 = scmp.eq.s32.totalorder %s15, 0
    %p78 = por %p76, %p77
    %p79 = scmp.ne.s32.totalorder %s67, %s68
    %p80 = scmp.eq.s32.totalorder %s16, 1
    %p81 = por %p79, %p80
    %p83 = scmp.ne.s32.totalorder %s68, %s82
    %p84 = scmp.eq.s32.totalorder %s16, 0
    %p85 = por %p83, %p84
    %s87 = sadd.s32 %s86, 1
    %p90 = scmp.eq.s32.totalorder %s10, 1
    %p91 = scmp.ne.s32.totalorder %s86, %s88
    %p92 = scmp.eq.s32.totalorder %s10, 0
    %p93 = por %p91, %p92
    %p94 = scmp.ne.s32.totalorder %s86, %s88
    %p95 = scmp.eq.s32.totalorder %s15, 1
    %p96 = por %p94, %p95
    %p97 = scmp.ne.s32.totalorder %s88, %s89
    %p98 = scmp.eq.s32.totalorder %s15, 0
    %p99 = por %p97, %p98
    %p100 = scmp.ne.s32.totalorder %s88, %s89
    %p101 = scmp.eq.s32.totalorder %s16, 1
    %p102 = por %p100, %p101
    %p104 = scmp.ne.s32.totalorder %s89, %s103
    %p105 = scmp.eq.s32.totalorder %s16, 0
    %p106 = por %p104, %p105
    %s107 = ssub.s32 %s10, %s17
    %p108 = scmp.eq.s32.totalorder %s107, 0
    %s110 = sadd.s32 %s109, 1
    %s111 = scalar_select %p108, %s109, %s110
    %p114 = pneg %p108
    %p115 = scmp.eq.s32.totalorder %s10, 1
    %p116 = por %p114, %p115
    %p117 = scmp.ne.s32.totalorder %s109, %s112
    %p118 = scmp.eq.s32.totalorder %s10, 0
    %p119 = por %p117, %p118
    %p120 = scmp.ne.s32.totalorder %s109, %s112
    %p121 = scmp.eq.s32.totalorder %s15, 1
    %p122 = por %p120, %p121
    %p123 = scmp.ne.s32.totalorder %s112, %s113
    %p124 = scmp.eq.s32.totalorder %s15, 0
    %p125 = por %p123, %p124
    %p126 = scmp.ne.s32.totalorder %s112, %s113
    %p127 = scmp.eq.s32.totalorder %s16, 1
    %p128 = por %p126, %p127
    %p130 = scmp.ne.s32.totalorder %s113, %s129
    %p131 = scmp.eq.s32.totalorder %s16, 0
    %p132 = por %p130, %p131
    %p133 = scmp.le.s32.totalorder 1, %s10
    %p134 = scmp.lt.s32.totalorder %s10, 3
    %p135 = pnand %p133, %p134
    %p136 = pneg %p135
    // Predicated region
    $region9: #{aaconv_forward.1} parent=5 // pred_check
      _
    $region10: #{aaconv_forward.1} parent=5 // pred_check_branch
      %138 = sbr.rel (%p135) target = $region12
    $region11: #{aaconv_forward.1} parent=5 // pred_region
      %s139 = ssub.s32 %s10, 1
      // Predicated region
      $region13: #{aaconv_forward.1} parent=11 // pred_check
        %p140 = pneg %p57
      $region14: #{aaconv_forward.1} parent=11 // pred_check_branch
        %142 = sbr.rel (%p140) target = $region16
      $region15: #{aaconv_forward.1} parent=11 // pred_region
        _
      $region16: #{aaconv_forward.1} parent=11 // pred_fallthru
        _
      // Predicated region
      $region17: #{aaconv_forward.1} parent=11 // pred_check
        %p143 = pneg %p78
      $region18: #{aaconv_forward.1} parent=11 // pred_check_branch
        %145 = sbr.rel (%p143) target = $region20
      $region19: #{aaconv_forward.1} parent=11 // pred_region
        _
      $region20: #{aaconv_forward.1} parent=11 // pred_fallthru
        _
      // Predicated region
      $region21: #{aaconv_forward.1} parent=11 // pred_check
        %p146 = pneg %p99
      $region22: #{aaconv_forward.1} parent=11 // pred_check_branch
        %148 = sbr.rel (%p146) target = $region24
      $region23: #{aaconv_forward.1} parent=11 // pred_region
        _
      $region24: #{aaconv_forward.1} parent=11 // pred_fallthru
        _
    $region12: #{aaconv_forward.1} parent=5 // pred_fallthru
      _
    %p149 = scmp.lt.s32.totalorder %s10, 2
    // Predicated region
    $region25: #{aaconv_forward.1} parent=5 // pred_check
      %p150 = pneg %p149
    $region26: #{aaconv_forward.1} parent=5 // pred_check_branch
      %152 = sbr.rel (%p150) target = $region28
    $region27: #{aaconv_forward.1} parent=5 // pred_region
      // Predicated region
      $region29: #{aaconv_forward.1} parent=27 // pred_check
        %p153 = pneg %p30
      $region30: #{aaconv_forward.1} parent=27 // pred_check_branch
        %155 = sbr.rel (%p153) target = $region32
      $region31: #{aaconv_forward.1} parent=27 // pred_region
        %p156 = scmp.lt.s32.totalorder %s10, 1
        %s157 = scalar_select %p156, %s10, 1
        %s158 = smul.addr %s157, 2
        %s159 = smul.addr %s158, 4
        %s160 = scalar_lea.vmem %s0, %s159
      $region32: #{aaconv_forward.1} parent=27 // pred_fallthru
        _
    $region28: #{aaconv_forward.1} parent=5 // pred_fallthru
      _
    %p161 = scmp.le.s32.totalorder 1, %s10
    %p162 = scmp.lt.s32.totalorder %s10, 3
    %p163 = pnand %p161, %p162
    %p164 = pneg %p163
    // Predicated region
    $region33: #{aaconv_forward.1} parent=5 // pred_check
      _
    $region34: #{aaconv_forward.1} parent=5 // pred_check_branch
      %166 = sbr.rel (%p163) target = $region36
    $region35: #{aaconv_forward.1} parent=5 // pred_region
      %s167 = ssub.s32 %s10, 1
      %p168 = scmp.lt.s32.totalorder %s15, 1
      %s169 = scalar_select %p168, %s15, 1
      %s170 = smul.addr %s169, 2
      %s171 = smul.addr %s170, 4
      %s172 = scalar_lea.vmem %s0, %s171
      %p173 = pneg %p36
      %p174 = pneg %p33
      %p175 = pneg %p57
      %p176 = pneg %p54
      %p177 = pneg %p78
      %p178 = pneg %p75
      %p179 = pneg %p99
      %p180 = pneg %p96
      %p181 = pneg %p125
      %p182 = pneg %p122
      %p183 = scmp.lt.s32.totalorder %s15, 1
      %s184 = scalar_select %p183, %s15, 1
      %s185 = smul.addr %s184, 2
      %s186 = smul.addr %s185, 4
      %s187 = scalar_lea.vmem %s4, %s186
      %p188 = scmp.lt.s32.totalorder %s15, 1
      %s189 = scalar_select %p188, %s15, 1
      %s190 = smul.addr %s189, 2
      %s191 = smul.addr %s190, 4
      %s192 = scalar_lea.vmem %s0, %s191
      %p193 = scmp.lt.s32.totalorder %s15, 1
      %s194 = scalar_select %p193, %s15, 1
      %s195 = smul.addr %s194, 2
      %s196 = smul.addr %s195, 4
      %s197 = scalar_lea.vmem %s4, %s196
      %v199 = vld [vmem:[%s192] sm:$0xff]
      %v201 = vcombine.high %v199, %v199
      %v203 = vpack.c.bf16 %v199, %v199
      %v204 = vpack.c.bf16 %v201, %v201
      %s205 = scalar_lea.vmem %s1, 8
      %v206 = vld [vmem:[%s205] sm:$0x3]
      %v207 = vld [vmem:[%s2] sm:$0xf]
      %209 = vset.pattern.permute.xlu0 0
      %210 = vperm.xlu0 %209, %v207
      %v211 = vpop.permute.xlu0 %210
      %vm213 = vcmask 31744
      %v215 = vsel %vm213, %v206, 0
      %vm217 = vcmask 1041408
      %v219 = vsel %vm217, %v203, 0
      %v222 = vsel %vm217, %v204, 0
      %224 = vmatprep.subr.bf16.mxu0 %v222
      %225 = vmatpush1.bf16.msra.mxu0 %v219
      %226 = vmatprep.subr.bf16.mxu0 0
      %227 = vmatpush1.bf16.msra.mxu0 0
      %228 = vmatprep.subr.bf16.mxu0 0
      %229 = vmatpush1.bf16.msra.mxu0 0
      %230 = vmatprep.subr.bf16.mxu0 0
      %231 = vmatpush1.bf16.msra.mxu0 0
      %232 = vmatprep.subr.bf16.mxu0 0
      %233 = vmatpush1.bf16.msra.mxu0 0
      %234 = vmatprep.subr.bf16.mxu0 0
      %235 = vmatpush1.bf16.msra.mxu0 0
      %236 = vmatprep.subr.bf16.mxu0 0
      %237 = vmatpush1.bf16.msra.mxu0 0
      %238 = vmatprep.subr.bf16.mxu0 0
      %239 = vmatpush1.bf16.msra.mxu0 0
      %240 = vmatprep.subr.bf16.mxu0 0
      %241 = vmatpush1.bf16.msra.mxu0 0
      %242 = vmatprep.subr.bf16.mxu0 0
      %243 = vmatpush1.bf16.msra.mxu0 0
      %244 = vmatprep.subr.bf16.mxu0 0
      %245 = vmatpush1.bf16.msra.mxu0 0
      %246 = vmatprep.subr.bf16.mxu0 0
      %247 = vmatpush1.bf16.msra.mxu0 0
      %248 = vmatprep.subr.bf16.mxu0 0
      %249 = vmatpush1.bf16.msra.mxu0 0
      %250 = vmatprep.subr.bf16.mxu0 0
      %251 = vmatpush1.bf16.msra.mxu0 0
      %252 = vmatprep.subr.bf16.mxu0 0
      %253 = vmatpush1.bf16.msra.mxu0 0
      %254 = vmatprep.subr.bf16.mxu0 0
      %255 = vmatpush1.bf16.msra.mxu0 0
      %256 = vmatprep.mubr.bf16.mxu0 0
      %257 = vmatmul.mubr.bf16.gmra.mrb[0].mxu0 %v215
      %v258 = vpop.f32.mrb[0].mxu0
      %v259 = vadd.f32 %v211, %v258
      %v260 = vpop.f32.mrb[0].mxu0
      %v261 = vadd.f32 %v211, %v260
      %v262 = vpop.f32.mrb[0].mxu0
      %v263 = vpop.f32.mrb[0].mxu0
      %264 = vdwg.mxu0
      %v265 = vld [vmem:[%s1] sm:$0x3]
      %v267 = vsel %vm213, %v265, 0
      %269 = vmatprep.subr.bf16.mxu0 %v222
      %270 = vmatpush1.bf16.msra.mxu0 %v219
      %271 = vmatprep.subr.bf16.mxu0 0
      %272 = vmatpush1.bf16.msra.mxu0 0
      %273 = vmatprep.subr.bf16.mxu0 0
      %274 = vmatpush1.bf16.msra.mxu0 0
      %275 = vmatprep.subr.bf16.mxu0 0
      %276 = vmatpush1.bf16.msra.mxu0 0
      %277 = vmatprep.subr.bf16.mxu0 0
      %278 = vmatpush1.bf16.msra.mxu0 0
      %279 = vmatprep.subr.bf16.mxu0 0
      %280 = vmatpush1.bf16.msra.mxu0 0
      %281 = vmatprep.subr.bf16.mxu0 0
      %282 = vmatpush1.bf16.msra.mxu0 0
      %283 = vmatprep.subr.bf16.mxu0 0
      %284 = vmatpush1.bf16.msra.mxu0 0
      %285 = vmatprep.subr.bf16.mxu0 0
      %286 = vmatpush1.bf16.msra.mxu0 0
      %287 = vmatprep.subr.bf16.mxu0 0
      %288 = vmatpush1.bf16.msra.mxu0 0
      %289 = vmatprep.subr.bf16.mxu0 0
      %290 = vmatpush1.bf16.msra.mxu0 0
      %291 = vmatprep.subr.bf16.mxu0 0
      %292 = vmatpush1.bf16.msra.mxu0 0
      %293 = vmatprep.subr.bf16.mxu0 0
      %294 = vmatpush1.bf16.msra.mxu0 0
      %295 = vmatprep.subr.bf16.mxu0 0
      %296 = vmatpush1.bf16.msra.mxu0 0
      %297 = vmatprep.subr.bf16.mxu0 0
      %298 = vmatpush1.bf16.msra.mxu0 0
      %299 = vmatprep.subr.bf16.mxu0 0
      %300 = vmatpush1.bf16.msra.mxu0 0
      %301 = vmatprep.mubr.bf16.mxu0 0
      %302 = vmatmul.mubr.bf16.gmra.mrb[0].mxu0 %v267
      %v303 = vpop.f32.mrb[0].mxu0
      %v304 = vadd.f32 0.0, %v303
      %v305 = vpop.f32.mrb[0].mxu0
      %v306 = vadd.f32 0.0, %v305
      %v307 = vpop.f32.mrb[0].mxu0
      %v308 = vpop.f32.mrb[0].mxu0
      %309 = vdwg.mxu0
      %310 = vrot.lane.b32.xlu0 %v304, 17
      %v311 = vpop.permute.xlu0 %310
      %312 = vrot.lane.b32.xlu0 %v306, 17
      %v313 = vpop.permute.xlu0 %312
      %v314 = vlaneseq
      %v315 = vand.u32 %v314, 127
      %vm316 = vcmp.lt.s32.totalorder %v315, 17
      %v317 = vsel %vm316, %v311, %v313
      %v318 = vsel %vm316, %v313, %v311
      %v319 = vld [vmem:[%s3] sm:$0x3]
      %v321 = vlaneseq
      %v322 = vshrl.u32 %v321, 7
      %v323 = vsub.s32 0, %v322
      %v324 = vrot.slane %v319, %v323
      %v325 = vlaneseq
      %v326 = vshrl.u32 %v325, 7
      %v327 = vsub.s32 1, %v326
      %v328 = vrot.slane %v319, %v327
      %v331 = vmul.f32 %v318, %v324
      %v332 = vmul.f32 %v317, %v328
      %v333 = vadd.f32 %v259, %v331
      %v334 = vadd.f32 %v261, %v332
      %s335 = scalar_lea.vmem %s1, 2
      %v336 = vld [vmem:[%s335] sm:$0x3]
      %v338 = vsel %vm213, %v336, 0
      %340 = vmatprep.subr.bf16.mxu0 %v222
      %341 = vmatpush1.bf16.msra.mxu0 %v219
      %342 = vmatprep.subr.bf16.mxu0 0
      %343 = vmatpush1.bf16.msra.mxu0 0
      %344 = vmatprep.subr.bf16.mxu0 0
      %345 = vmatpush1.bf16.msra.mxu0 0
      %346 = vmatprep.subr.bf16.mxu0 0
      %347 = vmatpush1.bf16.msra.mxu0 0
      %348 = vmatprep.subr.bf16.mxu0 0
      %349 = vmatpush1.bf16.msra.mxu0 0
      %350 = vmatprep.subr.bf16.mxu0 0
      %351 = vmatpush1.bf16.msra.mxu0 0
      %352 = vmatprep.subr.bf16.mxu0 0
      %353 = vmatpush1.bf16.msra.mxu0 0
      %354 = vmatprep.subr.bf16.mxu0 0
      %355 = vmatpush1.bf16.msra.mxu0 0
      %356 = vmatprep.subr.bf16.mxu0 0
      %357 = vmatpush1.bf16.msra.mxu0 0
      %358 = vmatprep.subr.bf16.mxu0 0
      %359 = vmatpush1.bf16.msra.mxu0 0
      %360 = vmatprep.subr.bf16.mxu0 0
      %361 = vmatpush1.bf16.msra.mxu0 0
      %362 = vmatprep.subr.bf16.mxu0 0
      %363 = vmatpush1.bf16.msra.mxu0 0
      %364 = vmatprep.subr.bf16.mxu0 0
      %365 = vmatpush1.bf16.msra.mxu0 0
      %366 = vmatprep.subr.bf16.mxu0 0
      %367 = vmatpush1.bf16.msra.mxu0 0
      %368 = vmatprep.subr.bf16.mxu0 0
      %369 = vmatpush1.bf16.msra.mxu0 0
      %370 = vmatprep.subr.bf16.mxu0 0
      %371 = vmatpush1.bf16.msra.mxu0 0
      %372 = vmatprep.mubr.bf16.mxu0 0
      %373 = vmatmul.mubr.bf16.gmra.mrb[0].mxu0 %v338
      %v374 = vpop.f32.mrb[0].mxu0
      %v375 = vadd.f32 0.0, %v374
      %v376 = vpop.f32.mrb[0].mxu0
      %v377 = vadd.f32 0.0, %v376
      %v378 = vpop.f32.mrb[0].mxu0
      %v379 = vpop.f32.mrb[0].mxu0
      %380 = vdwg.mxu0
      %381 = vrot.lane.b32.xlu0 %v375, 16
      %v382 = vpop.permute.xlu0 %381
      %383 = vrot.lane.b32.xlu0 %v377, 16
      %v384 = vpop.permute.xlu0 %383
      %vm385 = vcmp.lt.s32.totalorder %v315, 16
      %v386 = vsel %vm385, %v382, %v384
      %v387 = vsel %vm385, %v384, %v382
      %s388 = scalar_lea.vmem %s3, 2
      %v389 = vld [vmem:[%s388] sm:$0x3]
      %v391 = vlaneseq
      %v392 = vshrl.u32 %v391, 7
      %v393 = vsub.s32 0, %v392
      %v394 = vrot.slane %v389, %v393
      %v395 = vlaneseq
      %v396 = vshrl.u32 %v395, 7
      %v397 = vsub.s32 1, %v396
      %v398 = vrot.slane %v389, %v397
      %v401 = vmul.f32 %v387, %v394
      %v402 = vmul.f32 %v386, %v398
      %v403 = vadd.f32 %v333, %v401
      %v404 = vadd.f32 %v334, %v402
      %s405 = scalar_lea.vmem %s1, 4
      %v406 = vld [vmem:[%s405] sm:$0x3]
      %v408 = vsel %vm213, %v406, 0
      %410 = vmatprep.subr.bf16.mxu0 %v222
      %411 = vmatpush1.bf16.msra.mxu0 %v219
      %412 = vmatprep.subr.bf16.mxu0 0
      %413 = vmatpush1.bf16.msra.mxu0 0
      %414 = vmatprep.subr.bf16.mxu0 0
      %415 = vmatpush1.bf16.msra.mxu0 0
      %416 = vmatprep.subr.bf16.mxu0 0
      %417 = vmatpush1.bf16.msra.mxu0 0
      %418 = vmatprep.subr.bf16.mxu0 0
      %419 = vmatpush1.bf16.msra.mxu0 0
      %420 = vmatprep.subr.bf16.mxu0 0
      %421 = vmatpush1.bf16.msra.mxu0 0
      %422 = vmatprep.subr.bf16.mxu0 0
      %423 = vmatpush1.bf16.msra.mxu0 0
      %424 = vmatprep.subr.bf16.mxu0 0
      %425 = vmatpush1.bf16.msra.mxu0 0
      %426 = vmatprep.subr.bf16.mxu0 0
      %427 = vmatpush1.bf16.msra.mxu0 0
      %428 = vmatprep.subr.bf16.mxu0 0
      %429 = vmatpush1.bf16.msra.mxu0 0
      %430 = vmatprep.subr.bf16.mxu0 0
      %431 = vmatpush1.bf16.msra.mxu0 0
      %432 = vmatprep.subr.bf16.mxu0 0
      %433 = vmatpush1.bf16.msra.mxu0 0
      %434 = vmatprep.subr.bf16.mxu0 0
      %435 = vmatpush1.bf16.msra.mxu0 0
      %436 = vmatprep.subr.bf16.mxu0 0
      %437 = vmatpush1.bf16.msra.mxu0 0
      %438 = vmatprep.subr.bf16.mxu0 0
      %439 = vmatpush1.bf16.msra.mxu0 0
      %440 = vmatprep.subr.bf16.mxu0 0
      %441 = vmatpush1.bf16.msra.mxu0 0
      %442 = vmatprep.mubr.bf16.mxu0 0
      %443 = vmatmul.mubr.bf16.gmra.mrb[0].mxu0 %v408
      %v444 = vpop.f32.mrb[0].mxu0
      %v445 = vadd.f32 0.0, %v444
      %v446 = vpop.f32.mrb[0].mxu0
      %v447 = vadd.f32 0.0, %v446
      %v448 = vpop.f32.mrb[0].mxu0
      %v449 = vpop.f32.mrb[0].mxu0
      %450 = vdwg.mxu0
      %451 = vrot.lane.b32.xlu0 %v445, 15
      %v452 = vpop.permute.xlu0 %451
      %453 = vrot.lane.b32.xlu0 %v447, 15
      %v454 = vpop.permute.xlu0 %453
      %vm455 = vcmp.lt.s32.totalorder %v315, 15
      %v456 = vsel %vm455, %v452, %v454
      %v457 = vsel %vm455, %v454, %v452
      %s458 = scalar_lea.vmem %s3, 4
      %v459 = vld [vmem:[%s458] sm:$0x3]
      %v461 = vlaneseq
      %v462 = vshrl.u32 %v461, 7
      %v463 = vsub.s32 0, %v462
      %v464 = vrot.slane %v459, %v463
      %v465 = vlaneseq
      %v466 = vshrl.u32 %v465, 7
      %v467 = vsub.s32 1, %v466
      %v468 = vrot.slane %v459, %v467
      %v471 = vmul.f32 %v457, %v464
      %v472 = vmul.f32 %v456, %v468
      %v473 = vadd.f32 %v403, %v471
      %v474 = vadd.f32 %v404, %v472
      %s475 = scalar_lea.vmem %s1, 6
      %v476 = vld [vmem:[%s475] sm:$0x3]
      %v478 = vsel %vm213, %v476, 0
      %480 = vmatprep.subr.bf16.mxu0 %v222
      %481 = vmatpush1.bf16.msra.mxu0 %v219
      %482 = vmatprep.subr.bf16.mxu0 0
      %483 = vmatpush1.bf16.msra.mxu0 0
      %484 = vmatprep.subr.bf16.mxu0 0
      %485 = vmatpush1.bf16.msra.mxu0 0
      %486 = vmatprep.subr.bf16.mxu0 0
      %487 = vmatpush1.bf16.msra.mxu0 0
      %488 = vmatprep.subr.bf16.mxu0 0
      %489 = vmatpush1.bf16.msra.mxu0 0
      %490 = vmatprep.subr.bf16.mxu0 0
      %491 = vmatpush1.bf16.msra.mxu0 0
      %492 = vmatprep.subr.bf16.mxu0 0
      %493 = vmatpush1.bf16.msra.mxu0 0
      %494 = vmatprep.subr.bf16.mxu0 0
      %495 = vmatpush1.bf16.msra.mxu0 0
      %496 = vmatprep.subr.bf16.mxu0 0
      %497 = vmatpush1.bf16.msra.mxu0 0
      %498 = vmatprep.subr.bf16.mxu0 0
      %499 = vmatpush1.bf16.msra.mxu0 0
      %500 = vmatprep.subr.bf16.mxu0 0
      %501 = vmatpush1.bf16.msra.mxu0 0
      %502 = vmatprep.subr.bf16.mxu0 0
      %503 = vmatpush1.bf16.msra.mxu0 0
      %504 = vmatprep.subr.bf16.mxu0 0
      %505 = vmatpush1.bf16.msra.mxu0 0
      %506 = vmatprep.subr.bf16.mxu0 0
      %507 = vmatpush1.bf16.msra.mxu0 0
      %508 = vmatprep.subr.bf16.mxu0 0
      %509 = vmatpush1.bf16.msra.mxu0 0
      %510 = vmatprep.subr.bf16.mxu0 0
      %511 = vmatpush1.bf16.msra.mxu0 0
      %512 = vmatprep.mubr.bf16.mxu0 0
      %513 = vmatmul.mubr.bf16.gmra.mrb[0].mxu0 %v478
      %v514 = vpop.f32.mrb[0].mxu0
      %v515 = vadd.f32 0.0, %v514
      %v516 = vpop.f32.mrb[0].mxu0
      %v517 = vadd.f32 0.0, %v516
      %v518 = vpop.f32.mrb[0].mxu0
      %v519 = vpop.f32.mrb[0].mxu0
      %520 = vdwg.mxu0
      %521 = vrot.lane.b32.xlu0 %v515, 1
      %v522 = vpop.permute.xlu0 %521
      %523 = vrot.lane.b32.xlu0 %v517, 1
      %v524 = vpop.permute.xlu0 %523
      %vm525 = vcmp.lt.s32.totalorder %v315, 1
      %v526 = vsel %vm525, %v522, %v524
      %v527 = vsel %vm525, %v524, %v522
      %s528 = scalar_lea.vmem %s3, 6
      %v529 = vld [vmem:[%s528] sm:$0x3]
      %v531 = vlaneseq
      %v532 = vshrl.u32 %v531, 7
      %v533 = vsub.s32 0, %v532
      %v534 = vrot.slane %v529, %v533
      %v535 = vlaneseq
      %v536 = vshrl.u32 %v535, 7
      %v537 = vsub.s32 1, %v536
      %v538 = vrot.slane %v529, %v537
      %v541 = vmul.f32 %v527, %v534
      %v542 = vmul.f32 %v526, %v538
      %v543 = vadd.f32 %v473, %v541
      %v544 = vadd.f32 %v474, %v542
      %s545 = scalar_lea.vmem %s1, 10
      %v546 = vld [vmem:[%s545] sm:$0x3]
      %v548 = vsel %vm213, %v546, 0
      %550 = vmatprep.subr.bf16.mxu0 %v222
      %551 = vmatpush1.bf16.msra.mxu0 %v219
      %552 = vmatprep.subr.bf16.mxu0 0
      %553 = vmatpush1.bf16.msra.mxu0 0
      %554 = vmatprep.subr.bf16.mxu0 0
      %555 = vmatpush1.bf16.msra.mxu0 0
      %556 = vmatprep.subr.bf16.mxu0 0
      %557 = vmatpush1.bf16.msra.mxu0 0
      %558 = vmatprep.subr.bf16.mxu0 0
      %559 = vmatpush1.bf16.msra.mxu0 0
      %560 = vmatprep.subr.bf16.mxu0 0
      %561 = vmatpush1.bf16.msra.mxu0 0
      %562 = vmatprep.subr.bf16.mxu0 0
      %563 = vmatpush1.bf16.msra.mxu0 0
      %564 = vmatprep.subr.bf16.mxu0 0
      %565 = vmatpush1.bf16.msra.mxu0 0
      %566 = vmatprep.subr.bf16.mxu0 0
      %567 = vmatpush1.bf16.msra.mxu0 0
      %568 = vmatprep.subr.bf16.mxu0 0
      %569 = vmatpush1.bf16.msra.mxu0 0
      %570 = vmatprep.subr.bf16.mxu0 0
      %571 = vmatpush1.bf16.msra.mxu0 0
      %572 = vmatprep.subr.bf16.mxu0 0
      %573 = vmatpush1.bf16.msra.mxu0 0
      %574 = vmatprep.subr.bf16.mxu0 0
      %575 = vmatpush1.bf16.msra.mxu0 0
      %576 = vmatprep.subr.bf16.mxu0 0
      %577 = vmatpush1.bf16.msra.mxu0 0
      %578 = vmatprep.subr.bf16.mxu0 0
      %579 = vmatpush1.bf16.msra.mxu0 0
      %580 = vmatprep.subr.bf16.mxu0 0
      %581 = vmatpush1.bf16.msra.mxu0 0
      %582 = vmatprep.mubr.bf16.mxu0 0
      %583 = vmatmul.mubr.bf16.gmra.mrb[0].mxu0 %v548
      %v584 = vpop.f32.mrb[0].mxu0
      %v585 = vadd.f32 0.0, %v584
      %v586 = vpop.f32.mrb[0].mxu0
      %v587 = vadd.f32 0.0, %v586
      %v588 = vpop.f32.mrb[0].mxu0
      %v589 = vpop.f32.mrb[0].mxu0
      %590 = vdwg.mxu0
      %591 = vrot.lane.b32.xlu0 %v585, 127
      %v592 = vpop.permute.xlu0 %591
      %593 = vrot.lane.b32.xlu0 %v587, 127
      %v594 = vpop.permute.xlu0 %593
      %vm595 = vcmp.lt.s32.totalorder %v315, 127
      %v596 = vsel %vm595, %v592, %v594
      %v597 = vsel %vm595, %v594, %v592
      %s598 = scalar_lea.vmem %s3, 8
      %v599 = vld [vmem:[%s598] sm:$0x3]
      %v601 = vlaneseq
      %v602 = vshrl.u32 %v601, 7
      %v603 = vsub.s32 0, %v602
      %v604 = vrot.slane %v599, %v603
      %v605 = vlaneseq
      %v606 = vshrl.u32 %v605, 7
      %v607 = vsub.s32 1, %v606
      %v608 = vrot.slane %v599, %v607
      %v611 = vmul.f32 %v596, %v604
      %v612 = vmul.f32 %v597, %v608
      %v613 = vadd.f32 %v543, %v611
      %v614 = vadd.f32 %v544, %v612
      %s615 = scalar_lea.vmem %s1, 12
      %v616 = vld [vmem:[%s615] sm:$0x3]
      %v618 = vsel %vm213, %v616, 0
      %620 = vmatprep.subr.bf16.mxu0 %v222
      %621 = vmatpush1.bf16.msra.mxu0 %v219
      %622 = vmatprep.subr.bf16.mxu0 0
      %623 = vmatpush1.bf16.msra.mxu0 0
      %624 = vmatprep.subr.bf16.mxu0 0
      %625 = vmatpush1.bf16.msra.mxu0 0
      %626 = vmatprep.subr.bf16.mxu0 0
      %627 = vmatpush1.bf16.msra.mxu0 0
      %628 = vmatprep.subr.bf16.mxu0 0
      %629 = vmatpush1.bf16.msra.mxu0 0
      %630 = vmatprep.subr.bf16.mxu0 0
      %631 = vmatpush1.bf16.msra.mxu0 0
      %632 = vmatprep.subr.bf16.mxu0 0
      %633 = vmatpush1.bf16.msra.mxu0 0
      %634 = vmatprep.subr.bf16.mxu0 0
      %635 = vmatpush1.bf16.msra.mxu0 0
      %636 = vmatprep.subr.bf16.mxu0 0
      %637 = vmatpush1.bf16.msra.mxu0 0
      %638 = vmatprep.subr.bf16.mxu0 0
      %639 = vmatpush1.bf16.msra.mxu0 0
      %640 = vmatprep.subr.bf16.mxu0 0
      %641 = vmatpush1.bf16.msra.mxu0 0
      %642 = vmatprep.subr.bf16.mxu0 0
      %643 = vmatpush1.bf16.msra.mxu0 0
      %644 = vmatprep.subr.bf16.mxu0 0
      %645 = vmatpush1.bf16.msra.mxu0 0
      %646 = vmatprep.subr.bf16.mxu0 0
      %647 = vmatpush1.bf16.msra.mxu0 0
      %648 = vmatprep.subr.bf16.mxu0 0
      %649 = vmatpush1.bf16.msra.mxu0 0
      %650 = vmatprep.subr.bf16.mxu0 0
      %651 = vmatpush1.bf16.msra.mxu0 0
      %652 = vmatprep.mubr.bf16.mxu0 0
      %653 = vmatmul.mubr.bf16.gmra.mrb[0].mxu0 %v618
      %v654 = vpop.f32.mrb[0].mxu0
      %v655 = vadd.f32 0.0, %v654
      %v656 = vpop.f32.mrb[0].mxu0
      %v657 = vadd.f32 0.0, %v656
      %v658 = vpop.f32.mrb[0].mxu0
      %v659 = vpop.f32.mrb[0].mxu0
      %660 = vdwg.mxu0
      %661 = vrot.lane.b32.xlu0 %v655, 113
      %v662 = vpop.permute.xlu0 %661
      %663 = vrot.lane.b32.xlu0 %v657, 113
      %v664 = vpop.permute.xlu0 %663
      %vm665 = vcmp.lt.s32.totalorder %v315, 113
      %v666 = vsel %vm665, %v662, %v664
      %v667 = vsel %vm665, %v664, %v662
      %s668 = scalar_lea.vmem %s3, 10
      %v669 = vld [vmem:[%s668] sm:$0x3]
      %v671 = vlaneseq
      %v672 = vshrl.u32 %v671, 7
      %v673 = vsub.s32 0, %v672
      %v674 = vrot.slane %v669, %v673
      %v675 = vlaneseq
      %v676 = vshrl.u32 %v675, 7
      %v677 = vsub.s32 1, %v676
      %v678 = vrot.slane %v669, %v677
      %v681 = vmul.f32 %v666, %v674
      %v682 = vmul.f32 %v667, %v678
      %v683 = vadd.f32 %v613, %v681
      %v684 = vadd.f32 %v614, %v682
      %s685 = scalar_lea.vmem %s1, 14
      %v686 = vld [vmem:[%s685] sm:$0x3]
      %v688 = vsel %vm213, %v686, 0
      %690 = vmatprep.subr.bf16.mxu0 %v222
      %691 = vmatpush1.bf16.msra.mxu0 %v219
      %692 = vmatprep.subr.bf16.mxu0 0
      %693 = vmatpush1.bf16.msra.mxu0 0
      %694 = vmatprep.subr.bf16.mxu0 0
      %695 = vmatpush1.bf16.msra.mxu0 0
      %696 = vmatprep.subr.bf16.mxu0 0
      %697 = vmatpush1.bf16.msra.mxu0 0
      %698 = vmatprep.subr.bf16.mxu0 0
      %699 = vmatpush1.bf16.msra.mxu0 0
      %700 = vmatprep.subr.bf16.mxu0 0
      %701 = vmatpush1.bf16.msra.mxu0 0
      %702 = vmatprep.subr.bf16.mxu0 0
      %703 = vmatpush1.bf16.msra.mxu0 0
      %704 = vmatprep.subr.bf16.mxu0 0
      %705 = vmatpush1.bf16.msra.mxu0 0
      %706 = vmatprep.subr.bf16.mxu0 0
      %707 = vmatpush1.bf16.msra.mxu0 0
      %708 = vmatprep.subr.bf16.mxu0 0
      %709 = vmatpush1.bf16.msra.mxu0 0
      %710 = vmatprep.subr.bf16.mxu0 0
      %711 = vmatpush1.bf16.msra.mxu0 0
      %712 = vmatprep.subr.bf16.mxu0 0
      %713 = vmatpush1.bf16.msra.mxu0 0
      %714 = vmatprep.subr.bf16.mxu0 0
      %715 = vmatpush1.bf16.msra.mxu0 0
      %716 = vmatprep.subr.bf16.mxu0 0
      %717 = vmatpush1.bf16.msra.mxu0 0
      %718 = vmatprep.subr.bf16.mxu0 0
      %719 = vmatpush1.bf16.msra.mxu0 0
      %720 = vmatprep.subr.bf16.mxu0 0
      %721 = vmatpush1.bf16.msra.mxu0 0
      %722 = vmatprep.mubr.bf16.mxu0 0
      %723 = vmatmul.mubr.bf16.gmra.mrb[0].mxu0 %v688
      %v724 = vpop.f32.mrb[0].mxu0
      %v725 = vadd.f32 0.0, %v724
      %v726 = vpop.f32.mrb[0].mxu0
      %v727 = vadd.f32 0.0, %v726
      %v728 = vpop.f32.mrb[0].mxu0
      %v729 = vpop.f32.mrb[0].mxu0
      %730 = vdwg.mxu0
      %731 = vrot.lane.b32.xlu0 %v725, 112
      %v732 = vpop.permute.xlu0 %731
      %733 = vrot.lane.b32.xlu0 %v727, 112
      %v734 = vpop.permute.xlu0 %733
      %vm735 = vcmp.lt.s32.totalorder %v315, 112
      %v736 = vsel %vm735, %v732, %v734
      %v737 = vsel %vm735, %v734, %v732
      %s738 = scalar_lea.vmem %s3, 12
      %v739 = vld [vmem:[%s738] sm:$0x3]
      %v741 = vlaneseq
      %v742 = vshrl.u32 %v741, 7
      %v743 = vsub.s32 0, %v742
      %v744 = vrot.slane %v739, %v743
      %v745 = vlaneseq
      %v746 = vshrl.u32 %v745, 7
      %v747 = vsub.s32 1, %v746
      %v748 = vrot.slane %v739, %v747
      %v751 = vmul.f32 %v736, %v744
      %v752 = vmul.f32 %v737, %v748
      %v753 = vadd.f32 %v683, %v751
      %v754 = vadd.f32 %v684, %v752
      %s755 = scalar_lea.vmem %s1, 16
      %v756 = vld [vmem:[%s755] sm:$0x3]
      %v758 = vsel %vm213, %v756, 0
      %760 = vmatprep.subr.bf16.mxu0 %v222
      %761 = vmatpush1.bf16.msra.mxu0 %v219
      %762 = vmatprep.subr.bf16.mxu0 0
      %763 = vmatpush1.bf16.msra.mxu0 0
      %764 = vmatprep.subr.bf16.mxu0 0
      %765 = vmatpush1.bf16.msra.mxu0 0
      %766 = vmatprep.subr.bf16.mxu0 0
      %767 = vmatpush1.bf16.msra.mxu0 0
      %768 = vmatprep.subr.bf16.mxu0 0
      %769 = vmatpush1.bf16.msra.mxu0 0
      %770 = vmatprep.subr.bf16.mxu0 0
      %771 = vmatpush1.bf16.msra.mxu0 0
      %772 = vmatprep.subr.bf16.mxu0 0
      %773 = vmatpush1.bf16.msra.mxu0 0
      %774 = vmatprep.subr.bf16.mxu0 0
      %775 = vmatpush1.bf16.msra.mxu0 0
      %776 = vmatprep.subr.bf16.mxu0 0
      %777 = vmatpush1.bf16.msra.mxu0 0
      %778 = vmatprep.subr.bf16.mxu0 0
      %779 = vmatpush1.bf16.msra.mxu0 0
      %780 = vmatprep.subr.bf16.mxu0 0
      %781 = vmatpush1.bf16.msra.mxu0 0
      %782 = vmatprep.subr.bf16.mxu0 0
      %783 = vmatpush1.bf16.msra.mxu0 0
      %784 = vmatprep.subr.bf16.mxu0 0
      %785 = vmatpush1.bf16.msra.mxu0 0
      %786 = vmatprep.subr.bf16.mxu0 0
      %787 = vmatpush1.bf16.msra.mxu0 0
      %788 = vmatprep.subr.bf16.mxu0 0
      %789 = vmatpush1.bf16.msra.mxu0 0
      %790 = vmatprep.subr.bf16.mxu0 0
      %791 = vmatpush1.bf16.msra.mxu0 0
      %792 = vmatprep.mubr.bf16.mxu0 0
      %793 = vmatmul.mubr.bf16.gmra.mrb[0].mxu0 %v758
      %v794 = vpop.f32.mrb[0].mxu0
      %v795 = vadd.f32 0.0, %v794
      %v796 = vpop.f32.mrb[0].mxu0
      %v797 = vadd.f32 0.0, %v796
      %v798 = vpop.f32.mrb[0].mxu0
      %v799 = vpop.f32.mrb[0].mxu0
      %800 = vdwg.mxu0
      %801 = vrot.lane.b32.xlu0 %v795, 111
      %v802 = vpop.permute.xlu0 %801
      %803 = vrot.lane.b32.xlu0 %v797, 111
      %v804 = vpop.permute.xlu0 %803
      %vm805 = vcmp.lt.s32.totalorder %v315, 111
      %v806 = vsel %vm805, %v802, %v804
      %v807 = vsel %vm805, %v804, %v802
      %s808 = scalar_lea.vmem %s3, 14
      %v809 = vld [vmem:[%s808] sm:$0x3]
      %v811 = vlaneseq
      %v812 = vshrl.u32 %v811, 7
      %v813 = vsub.s32 0, %v812
      %v814 = vrot.slane %v809, %v813
      %v815 = vlaneseq
      %v816 = vshrl.u32 %v815, 7
      %v817 = vsub.s32 1, %v816
      %v818 = vrot.slane %v809, %v817
      %v821 = vmul.f32 %v806, %v814
      %v822 = vmul.f32 %v807, %v818
      %v823 = vadd.f32 %v753, %v821
      %v824 = vadd.f32 %v754, %v822
      %s825 = scalar_lea.vmem %s1, 18
      %v826 = vld [vmem:[%s825] sm:$0x3]
      %s827 = scalar_lea.vmem %s2, 4
      %v828 = vld [vmem:[%s827] sm:$0xf]
      %830 = vset.pattern.permute.xlu0 0
      %831 = vperm.xlu0 %830, %v828
      %v832 = vpop.permute.xlu0 %831
      %v835 = vsel %vm213, %v826, 0
      %837 = vmatprep.subr.bf16.mxu0 %v222
      %838 = vmatpush1.bf16.msra.mxu0 %v219
      %839 = vmatprep.subr.bf16.mxu0 0
      %840 = vmatpush1.bf16.msra.mxu0 0
      %841 = vmatprep.subr.bf16.mxu0 0
      %842 = vmatpush1.bf16.msra.mxu0 0
      %843 = vmatprep.subr.bf16.mxu0 0
      %844 = vmatpush1.bf16.msra.mxu0 0
      %845 = vmatprep.subr.bf16.mxu0 0
      %846 = vmatpush1.bf16.msra.mxu0 0
      %847 = vmatprep.subr.bf16.mxu0 0
      %848 = vmatpush1.bf16.msra.mxu0 0
      %849 = vmatprep.subr.bf16.mxu0 0
      %850 = vmatpush1.bf16.msra.mxu0 0
      %851 = vmatprep.subr.bf16.mxu0 0
      %852 = vmatpush1.bf16.msra.mxu0 0
      %853 = vmatprep.subr.bf16.mxu0 0
      %854 = vmatpush1.bf16.msra.mxu0 0
      %855 = vmatprep.subr.bf16.mxu0 0
      %856 = vmatpush1.bf16.msra.mxu0 0
      %857 = vmatprep.subr.bf16.mxu0 0
      %858 = vmatpush1.bf16.msra.mxu0 0
      %859 = vmatprep.subr.bf16.mxu0 0
      %860 = vmatpush1.bf16.msra.mxu0 0
      %861 = vmatprep.subr.bf16.mxu0 0
      %862 = vmatpush1.bf16.msra.mxu0 0
      %863 = vmatprep.subr.bf16.mxu0 0
      %864 = vmatpush1.bf16.msra.mxu0 0
      %865 = vmatprep.subr.bf16.mxu0 0
      %866 = vmatpush1.bf16.msra.mxu0 0
      %867 = vmatprep.subr.bf16.mxu0 0
      %868 = vmatpush1.bf16.msra.mxu0 0
      %869 = vmatprep.mubr.bf16.mxu0 0
      %870 = vmatmul.mubr.bf16.gmra.mrb[0].mxu0 %v835
      %v871 = vpop.f32.mrb[0].mxu0
      %v872 = vadd.f32 %v832, %v871
      %v873 = vpop.f32.mrb[0].mxu0
      %v874 = vadd.f32 %v832, %v873
      %v875 = vpop.f32.mrb[0].mxu0
      %v876 = vpop.f32.mrb[0].mxu0
      %877 = vdwg.mxu0
      %v878 = vmax.f32 %v872, 0.0
      %v879 = vmax.f32 %v874, 0.0
      %s880 = scalar_lea.vmem %s1, 20
      %v881 = vld [vmem:[%s880] sm:$0x3]
      %v882 = vpack.c.bf16 %v878, %v878
      %v883 = vpack.c.bf16 %v879, %v879
      %s884 = scalar_lea.vmem %s2, 8
      %v885 = vld [vmem:[%s884] sm:$0xf]
      %887 = vset.pattern.permute.xlu0 0
      %888 = vperm.xlu0 %887, %v885
      %v889 = vpop.permute.xlu0 %888
      %v892 = vsel %vm213, %v881, 0
      %v895 = vsel %vm217, %v882, 0
      %v898 = vsel %vm217, %v883, 0
      %900 = vmatprep.subr.bf16.mxu0 %v898
      %901 = vmatpush1.bf16.msra.mxu0 %v895
      %902 = vmatprep.subr.bf16.mxu0 0
      %903 = vmatpush1.bf16.msra.mxu0 0
      %904 = vmatprep.subr.bf16.mxu0 0
      %905 = vmatpush1.bf16.msra.mxu0 0
      %906 = vmatprep.subr.bf16.mxu0 0
      %907 = vmatpush1.bf16.msra.mxu0 0
      %908 = vmatprep.subr.bf16.mxu0 0
      %909 = vmatpush1.bf16.msra.mxu0 0
      %910 = vmatprep.subr.bf16.mxu0 0
      %911 = vmatpush1.bf16.msra.mxu0 0
      %912 = vmatprep.subr.bf16.mxu0 0
      %913 = vmatpush1.bf16.msra.mxu0 0
      %914 = vmatprep.subr.bf16.mxu0 0
      %915 = vmatpush1.bf16.msra.mxu0 0
      %916 = vmatprep.subr.bf16.mxu0 0
      %917 = vmatpush1.bf16.msra.mxu0 0
      %918 = vmatprep.subr.bf16.mxu0 0
      %919 = vmatpush1.bf16.msra.mxu0 0
      %920 = vmatprep.subr.bf16.mxu0 0
      %921 = vmatpush1.bf16.msra.mxu0 0
      %922 = vmatprep.subr.bf16.mxu0 0
      %923 = vmatpush1.bf16.msra.mxu0 0
      %924 = vmatprep.subr.bf16.mxu0 0
      %925 = vmatpush1.bf16.msra.mxu0 0
      %926 = vmatprep.subr.bf16.mxu0 0
      %927 = vmatpush1.bf16.msra.mxu0 0
      %928 = vmatprep.subr.bf16.mxu0 0
      %929 = vmatpush1.bf16.msra.mxu0 0
      %930 = vmatprep.subr.bf16.mxu0 0
      %931 = vmatpush1.bf16.msra.mxu0 0
      %932 = vmatprep.mubr.bf16.mxu0 0
      %933 = vmatmul.mubr.bf16.gmra.mrb[0].mxu0 %v892
      %v934 = vpop.f32.mrb[0].mxu0
      %v935 = vadd.f32 %v889, %v934
      %v936 = vpop.f32.mrb[0].mxu0
      %v937 = vadd.f32 %v889, %v936
      %v938 = vpop.f32.mrb[0].mxu0
      %v939 = vpop.f32.mrb[0].mxu0
      %940 = vdwg.mxu0
      %v941 = vxor.u32 %v935, 2147483648
      %v942 = vxor.u32 %v937, 2147483648
      %v943 = vmul.f32 %v941, 1.442695
      %v944 = vpow.pop %v943
      %v945 = vmul.f32 %v942, 1.442695
      %v946 = vpow.pop %v945
      %v947 = vadd.f32 %v944, 1.0
      %v948 = vadd.f32 %v946, 1.0
      %v949 = vrcp.pop %v947
      %v950 = vmul.f32 1.0, %v949
      %v951 = vrcp.pop %v948
      %v952 = vmul.f32 1.0, %v951
      %v953 = vmul.f32 %v950, %v823
      %v954 = vmul.f32 %v952, %v824
      %v957 = vcombine.low %v953, %v954
      %959 = vst [vmem:[%s197] sm:$0xff] %v957
      %p960 = scmp.lt.s32.totalorder %s15, 1
      %s961 = scalar_select %p960, %s15, 1
      %s962 = smul.addr %s961, 2
      %s963 = smul.addr %s962, 4
      %s964 = scalar_lea.vmem %s4, %s963
      // Predicated region
      $region37: #{aaconv_forward.1} parent=35 // pred_check
        %p965 = pneg %p122
      $region38: #{aaconv_forward.1} parent=35 // pred_check_branch
        %967 = sbr.rel (%p965) target = $region40
      $region39: #{aaconv_forward.1} parent=35 // pred_region
        _
      $region40: #{aaconv_forward.1} parent=35 // pred_fallthru
        _
    $region36: #{aaconv_forward.1} parent=5 // pred_fallthru
      _
    %p968 = scmp.le.s32.totalorder 2, %s10
    // Predicated region
    $region41: #{aaconv_forward.1} parent=5 // pred_check
      %p969 = pneg %p968
    $region42: #{aaconv_forward.1} parent=5 // pred_check_branch
      %971 = sbr.rel (%p969) target = $region44
    $region43: #{aaconv_forward.1} parent=5 // pred_region
      %s972 = ssub.s32 %s10, 2
      // Predicated region
      $region45: #{aaconv_forward.1} parent=43 // pred_check
        %p973 = pneg %p128
      $region46: #{aaconv_forward.1} parent=43 // pred_check_branch
        %975 = sbr.rel (%p973) target = $region48
      $region47: #{aaconv_forward.1} parent=43 // pred_region
        %p976 = scmp.lt.s32.totalorder %s16, 1
        %s977 = scalar_select %p976, %s16, 1
        %s978 = smul.addr %s977, 2
        %s979 = smul.addr %s978, 4
        %s980 = scalar_lea.vmem %s4, %s979
      $region48: #{aaconv_forward.1} parent=43 // pred_fallthru
        _
    $region44: #{aaconv_forward.1} parent=5 // pred_fallthru
      _
  $region6: #{aaconv_forward.1} parent=0 // loop_footer
    %s14 = sadd.s32 1, %s10
  $region7: #{aaconv_forward.1} parent=0 // loop_footer_branch
    %9 = sbr.rel target = $region3
  $region8: #{aaconv_forward.1} parent=0 // loop_exit
    _

</llo_original>
